<compile_context>
chip_gen: v5e
topology: v5e:2x2
jax: 0.10.0
libtpu: 0.0.40
codegen_flags: <defaults>
</compile_context>

<pallas_src>
import jax
import jax.numpy as jnp
from jax.experimental import pallas as pl
from jax.experimental.pallas import tpu as pltpu


def _round_up(x: int, m: int) -> int:
    return (x + m - 1) // m * m


def _pad2(a, rows: int, cols: int):
    """Zero-pad a 2-D array up to (rows, cols); no-op if already that shape."""
    if a.shape == (rows, cols):
        return a
    return jnp.pad(a, ((0, rows - a.shape[0]), (0, cols - a.shape[1])))


def _plan(B: int, d_in: int, hidden: int, num_classes: int):
    """Tile plan. hp/cp/d_pad/tk depend only on the model dims (so the weight
    padding can be hoisted); tm/b_pad depend on the batch."""
    hp = _round_up(hidden, 128)          # lane-dense feature dim
    cp = _round_up(num_classes, 128)     # lane-dense class dim
    d_pad = _round_up(d_in, 128)
    tk = min(1024, d_pad)                # 1024-wide reduction tiles (DMA sweet spot)
    d_pad = _round_up(d_pad, tk)
    # Batch tile: tiny batches -> tight tile (multiple of 8, f32 sublane rule);
    # large batches -> wide MXU tiles while keeping >=2 tiles for v7x megacore.
    if B <= 128:
        tm = max(8, _round_up(B, 8))
    elif B <= 512:
        tm = 128
    else:
        tm = 256
    b_pad = _round_up(B, tm)
    return tm, tk, b_pad, d_pad, hp, cp


def classifier_kernel(x_ref, w1_ref, b1_ref, w2_ref, b2_ref, pred_ref, feat_ref):
    """Fused backbone-MLP + Identity bottleneck + Linear head (K-tiled).

    Grid = (batch_tiles, k_tiles); k reduces over flattened D_in.
      x_ref    : (tm, tk)   f32    input tile (cast to bf16 in-kernel)
      w1_ref   : (tk, HP)   bf16   backbone weight tile (pre-transposed)
      b1_ref   : (1, HP)    f32    backbone bias   (grid-invariant, resident)
      w2_ref   : (HP, CP)   bf16   head weight     (grid-invariant, resident)
      b2_ref   : (1, CP)    f32    head bias       (grid-invariant, resident)
      pred_ref : (tm, CP)   f32    predictions output tile (written at k==last)
      feat_ref : (tm, HP)   f32    features output tile, doubles as the f32
                                   accumulator (block index constant in k).
    """
    k = pl.program_id(1)

    @pl.when(k == 0)
    def _():
        feat_ref[...] = jnp.zeros_like(feat_ref)

    # Backbone partial matmul for this K chunk: free VPU f32->bf16 cast on the
    # input tile, bf16 MXU operands, f32 accumulation into the resident output.
    feat_ref[...] += jnp.dot(x_ref[...].astype(jnp.bfloat16), w1_ref[...],
                             preferred_element_type=jnp.float32)

    @pl.when(k == pl.num_programs(1) - 1)
    def _():
        # Epilogue once per output tile: bias + ReLU in f32 (v5e VALU is
        # f32-only); bottleneck = Identity, so these are the features.
        f = jnp.maximum(feat_ref[...] + b1_ref[...], 0.0)
        feat_ref[...] = f
        # Head: Linear(features_dim -> num_classes), bf16 operands, f32 acc.
        pred_ref[...] = (jnp.dot(f.astype(w2_ref.dtype), w2_ref[...],
                                 preferred_element_type=jnp.float32)
                         + b2_ref[...]).astype(pred_ref.dtype)


def prepare_params(w1, b1, w2, b2):
    """One-time weight preparation (padding to lane-dense dims + bf16 cast).

    Call once at init — NOT per forward.  Zero padding is exact: padded
    feature columns give relu(0 + 0) = 0 and padded W2 rows contribute 0.
    """
    d_in, hidden = w1.shape
    num_classes = w2.shape[1]
    _, _, _, d_pad, hp, cp = _plan(1, d_in, hidden, num_classes)
    return {
        "d_in": d_in, "hidden": hidden, "num_classes": num_classes,
        "w1": _pad2(w1.astype(jnp.bfloat16), d_pad, hp),
        "b1": _pad2(b1.reshape(1, hidden).astype(jnp.float32), 1, hp),
        "w2": _pad2(w2.astype(jnp.bfloat16), hp, cp),
        "b2": _pad2(b2.reshape(1, num_classes).astype(jnp.float32), 1, cp),
    }


def classifier_forward(x_nchw, prepared):
    """Flatten NCHW input, pad only the batch/reduction dims when needed, run
    the tiled Pallas kernel, and slice out the real (B, classes)/(B, hidden)."""
    B = x_nchw.shape[0]
    d_in = prepared["d_in"]
    hidden = prepared["hidden"]
    num_classes = prepared["num_classes"]

    tm, tk, b_pad, d_pad, hp, cp = _plan(B, d_in, hidden, num_classes)

    x_flat = x_nchw.reshape(B, -1)          # == torch .view(-1, d_in)
    assert x_flat.shape[1] == d_in
    xp = _pad2(x_flat, b_pad, d_pad)        # native f32; cast in-kernel

    grid = (b_pad // tm, d_pad // tk)

    # TODO(synk): switch out_shape dtypes to bf16 (keeping f32 accumulation in
    # VMEM via a scratch) if downstream tolerates bf16 features/predictions —
    # halves output writeback, biggest win on v5e's single store slot.
    preds_p, feats_p = pl.pallas_call(
        classifier_kernel,
        out_shape=(jax.ShapeDtypeStruct((b_pad, cp), jnp.float32),
                   jax.ShapeDtypeStruct((b_pad, hp), jnp.float32)),
        grid_spec=pltpu.PrefetchScalarGridSpec(
            num_scalar_prefetch=0,
            grid=grid,
            in_specs=[
                pl.BlockSpec((tm, tk), lambda i, k: (i, k)),   # x (f32)
                pl.BlockSpec((tk, hp), lambda i, k: (k, 0)),   # W1 (bf16)
                pl.BlockSpec((1, hp), lambda i, k: (0, 0)),    # b1 (resident)
                pl.BlockSpec((hp, cp), lambda i, k: (0, 0)),   # W2 (resident)
                pl.BlockSpec((1, cp), lambda i, k: (0, 0)),    # b2 (resident)
            ],
            out_specs=[
                pl.BlockSpec((tm, cp), lambda i, k: (i, 0)),   # predictions
                pl.BlockSpec((tm, hp), lambda i, k: (i, 0)),   # features (acc)
            ],
        ),
        compiler_params=pltpu.CompilerParams(
            dimension_semantics=("parallel", "arbitrary"),
            vmem_limit_bytes=48 * 1024 * 1024,   # within v7x's 64 MiB/TC
        ),
    )(xp, prepared["w1"], prepared["b1"], prepared["w2"], prepared["b2"])

    # Strip padding (plain-JAX glue).
    return preds_p[:B, :num_classes], feats_p[:B, :hidden]


def init_params(key, d_in, hidden, num_classes):
    """Deterministic parameter init (PyTorch-Linear-style uniform bounds)."""
    k1, k2, k3, k4 = jax.random.split(key, 4)
    bound1 = 1.0 / jnp.sqrt(d_in)
    bound2 = 1.0 / jnp.sqrt(hidden)
    # stored as (in, out): equivalent to torch's (out, in) weight, transposed
    w1 = jax.random.uniform(k1, (d_in, hidden), jnp.float32, -bound1, bound1)
    b1 = jax.random.uniform(k2, (1, hidden), jnp.float32, -bound1, bound1)
    w2 = jax.random.uniform(k3, (hidden, num_classes), jnp.float32, -bound2, bound2)
    b2 = jax.random.uniform(k4, (1, num_classes), jnp.float32, -bound2, bound2)
    return w1, b1, w2, b2


if __name__ == "__main__":
    B, C_in, S = 2, 4, 16          # input: (minibatch, channels, H, W)
    HIDDEN = 32                    # backbone.out_features == features_dim
    NUM_CLASSES = 10

    key = jax.random.PRNGKey(0)
    kx, kp = jax.random.split(key)
    x = jax.random.normal(kx, (B, C_in, S, S), dtype=jnp.float32)

    d_in = C_in * S * S
    w1, b1, w2, b2 = init_params(kp, d_in, HIDDEN, NUM_CLASSES)

    # Weight padding/casting done ONCE here (hoisted out of the forward path).
    prepared = prepare_params(w1, b1, w2, b2)

    predictions, features = classifier_forward(x, prepared)
    jax.block_until_ready((predictions, features))

    # Reference in plain JAX using the same bf16-operand / f32-accumulate math.
    x_flat = x.reshape(B, -1)
    xb = x_flat.astype(jnp.bfloat16)
    w1b = w1.astype(jnp.bfloat16)
    w2b = w2.astype(jnp.bfloat16)
    f_ref = jnp.maximum(
        jnp.dot(xb, w1b, preferred_element_type=jnp.float32) + b1, 0.0)
    p_ref = jnp.dot(f_ref.astype(jnp.bfloat16), w2b,
                    preferred_element_type=jnp.float32) + b2

    assert predictions.shape == (B, NUM_CLASSES)
    assert features.shape == (B, HIDDEN)
    assert jnp.allclose(features, f_ref, atol=1e-2, rtol=1e-2)
    assert jnp.allclose(predictions, p_ref, atol=1e-2, rtol=1e-2)

    print("KERNEL_OK")
</pallas_src>

<mosaic_0001>
module attributes {stable_mosaic.version = 11 : i64} {
  func.func @classifier_kernel(%arg0: i32, %arg1: i32, %arg2: memref<8x1024xf32, #tpu.memory_space<vmem>>, %arg3: memref<1024x128xbf16, #tpu.memory_space<vmem>>, %arg4: memref<1x128xf32, #tpu.memory_space<vmem>>, %arg5: memref<128x128xbf16, #tpu.memory_space<vmem>>, %arg6: memref<1x128xf32, #tpu.memory_space<vmem>>, %arg7: memref<8x128xf32, #tpu.memory_space<vmem>>, %arg8: memref<8x128xf32, #tpu.memory_space<vmem>>) attributes {dimension_semantics = [#tpu.dimension_semantics<parallel>, #tpu.dimension_semantics<arbitrary>], iteration_bounds = array<i64: 1, 1>, scalar_prefetch = 0 : i64, scratch_operands = 0 : i64, tpu.core_type = #tpu.core_type<tc>, window_params = [{transform_indices = @transform_0, window_bounds = array<i64: 8, 1024>}, {transform_indices = @transform_1, window_bounds = array<i64: 1024, 128>}, {pipeline_mode = #tpu.pipeline_mode<synchronous>, transform_indices = @transform_2, window_bounds = array<i64: 1, 128>}, {pipeline_mode = #tpu.pipeline_mode<synchronous>, transform_indices = @transform_3, window_bounds = array<i64: 128, 128>}, {pipeline_mode = #tpu.pipeline_mode<synchronous>, transform_indices = @transform_4, window_bounds = array<i64: 1, 128>}, {transform_indices = @transform_5, window_bounds = array<i64: 8, 128>}, {transform_indices = @transform_6, window_bounds = array<i64: 8, 128>}]} {
    %c0_i32 = arith.constant 0 : i32
    %0 = arith.cmpi eq, %arg1, %c0_i32 : i32
    %1 = arith.extui %0 : i1 to i32
    %c0_i32_0 = arith.constant 0 : i32
    %2 = arith.cmpi ne, %1, %c0_i32_0 : i32
    scf.if %2 {
      %cst_10 = arith.constant 0.000000e+00 : f32
      %13 = vector.broadcast %cst_10 : f32 to vector<8x128xf32>
      %c0_11 = arith.constant 0 : index
      %c0_12 = arith.constant 0 : index
      %14 = vector.load %arg8[%c0_11, %c0_12] : memref<8x128xf32, #tpu.memory_space<vmem>>, vector<8x128xf32>
      tpu.vector_store %arg8[%c0_11, %c0_12], %13 {strides = array<i32>} : memref<8x128xf32, #tpu.memory_space<vmem>>, vector<8x128xf32>,
    } else {
    }
    %c0 = arith.constant 0 : index
    %c0_1 = arith.constant 0 : index
    %3 = vector.load %arg8[%c0, %c0_1] : memref<8x128xf32, #tpu.memory_space<vmem>>, vector<8x128xf32>
    %c0_2 = arith.constant 0 : index
    %c0_3 = arith.constant 0 : index
    %4 = vector.load %arg2[%c0_2, %c0_3] : memref<8x1024xf32, #tpu.memory_space<vmem>>, vector<8x1024xf32>
    %5 = arith.truncf %4 : vector<8x1024xf32> to vector<8x1024xbf16>
    %c0_4 = arith.constant 0 : index
    %c0_5 = arith.constant 0 : index
    %6 = vector.load %arg3[%c0_4, %c0_5] : memref<1024x128xbf16, #tpu.memory_space<vmem>>, vector<1024x128xbf16>
    %cst = arith.constant dense<0.000000e+00> : vector<8x128xf32>
    %7 = tpu.matmul %5, %6, %cst {dimension_numbers = #tpu.dot_dimension_numbers<[1], [0], [0], [1], [0, 0, 1, 1], [], []>} : vector<8x1024xbf16>, vector<1024x128xbf16>, vector<8x128xf32> -> vector<8x128xf32>
    %8 = arith.addf %3, %7 : vector<8x128xf32>
    %c0_6 = arith.constant 0 : index
    %c0_7 = arith.constant 0 : index
    %9 = vector.load %arg8[%c0_6, %c0_7] : memref<8x128xf32, #tpu.memory_space<vmem>>, vector<8x128xf32>
    tpu.vector_store %arg8[%c0_6, %c0_7], %8 {strides = array<i32>} : memref<8x128xf32, #tpu.memory_space<vmem>>, vector<8x128xf32>,
    %c0_i32_8 = arith.constant 0 : i32
    %10 = arith.cmpi eq, %arg1, %c0_i32_8 : i32
    %11 = arith.extui %10 : i1 to i32
    %c0_i32_9 = arith.constant 0 : i32
    %12 = arith.cmpi ne, %11, %c0_i32_9 : i32
    scf.if %12 {
      %c0_10 = arith.constant 0 : index
      %c0_11 = arith.constant 0 : index
      %13 = vector.load %arg8[%c0_10, %c0_11] : memref<8x128xf32, #tpu.memory_space<vmem>>, vector<8x128xf32>
      %c0_12 = arith.constant 0 : index
      %c0_13 = arith.constant 0 : index
      %14 = vector.load %arg4[%c0_12, %c0_13] : memref<1x128xf32, #tpu.memory_space<vmem>>, vector<1x128xf32>
      %15 = vector.broadcast %14 : vector<1x128xf32> to vector<8x128xf32>
      %16 = arith.addf %13, %15 : vector<8x128xf32>
      %cst_14 = arith.constant 0.000000e+00 : f32
      %17 = vector.broadcast %cst_14 : f32 to vector<8x128xf32>
      %18 = arith.maximumf %16, %17 : vector<8x128xf32>
      %c0_15 = arith.constant 0 : index
      %c0_16 = arith.constant 0 : index
      %19 = vector.load %arg8[%c0_15, %c0_16] : memref<8x128xf32, #tpu.memory_space<vmem>>, vector<8x128xf32>
      tpu.vector_store %arg8[%c0_15, %c0_16], %18 {strides = array<i32>} : memref<8x128xf32, #tpu.memory_space<vmem>>, vector<8x128xf32>,
      %20 = arith.truncf %18 : vector<8x128xf32> to vector<8x128xbf16>
      %c0_17 = arith.constant 0 : index
      %c0_18 = arith.constant 0 : index
      %21 = vector.load %arg5[%c0_17, %c0_18] : memref<128x128xbf16, #tpu.memory_space<vmem>>, vector<128x128xbf16>
      %cst_19 = arith.constant dense<0.000000e+00> : vector<8x128xf32>
      %22 = tpu.matmul %20, %21, %cst_19 {dimension_numbers = #tpu.dot_dimension_numbers<[1], [0], [0], [1], [0, 0, 1, 1], [], []>} : vector<8x128xbf16>, vector<128x128xbf16>, vector<8x128xf32> -> vector<8x128xf32>
      %c0_20 = arith.constant 0 : index
      %c0_21 = arith.constant 0 : index
      %23 = vector.load %arg6[%c0_20, %c0_21] : memref<1x128xf32, #tpu.memory_space<vmem>>, vector<1x128xf32>
      %24 = vector.broadcast %23 : vector<1x128xf32> to vector<8x128xf32>
      %25 = arith.addf %22, %24 : vector<8x128xf32>
      %c0_22 = arith.constant 0 : index
      %c0_23 = arith.constant 0 : index
      %26 = vector.load %arg7[%c0_22, %c0_23] : memref<8x128xf32, #tpu.memory_space<vmem>>, vector<8x128xf32>
      tpu.vector_store %arg7[%c0_22, %c0_23], %25 {strides = array<i32>} : memref<8x128xf32, #tpu.memory_space<vmem>>, vector<8x128xf32>,
    } else {
    }
    return
  }
  func.func @transform_0(%arg0: i32, %arg1: i32) -> (i32, i32) {
    %c0_i32 = arith.constant 0 : i32
    return %arg0, %arg1 : i32, i32
  }
  func.func @transform_1(%arg0: i32, %arg1: i32) -> (i32, i32) {
    %c0_i32 = arith.constant 0 : i32
    %c0_i32_0 = arith.constant 0 : i32
    return %arg1, %c0_i32 : i32, i32
  }
  func.func @transform_2(%arg0: i32, %arg1: i32) -> (i32, i32) {
    %c0_i32 = arith.constant 0 : i32
    %c0_i32_0 = arith.constant 0 : i32
    %c0_i32_1 = arith.constant 0 : i32
    return %c0_i32, %c0_i32_0 : i32, i32
  }
  func.func @transform_3(%arg0: i32, %arg1: i32) -> (i32, i32) {
    %c0_i32 = arith.constant 0 : i32
    %c0_i32_0 = arith.constant 0 : i32
    %c0_i32_1 = arith.constant 0 : i32
    return %c0_i32, %c0_i32_0 : i32, i32
  }
  func.func @transform_4(%arg0: i32, %arg1: i32) -> (i32, i32) {
    %c0_i32 = arith.constant 0 : i32
    %c0_i32_0 = arith.constant 0 : i32
    %c0_i32_1 = arith.constant 0 : i32
    return %c0_i32, %c0_i32_0 : i32, i32
  }
  func.func @transform_5(%arg0: i32, %arg1: i32) -> (i32, i32) {
    %c0_i32 = arith.constant 0 : i32
    %c0_i32_0 = arith.constant 0 : i32
    return %arg0, %c0_i32 : i32, i32
  }
  func.func @transform_6(%arg0: i32, %arg1: i32) -> (i32, i32) {
    %c0_i32 = arith.constant 0 : i32
    %c0_i32_0 = arith.constant 0 : i32
    return %arg0, %c0_i32 : i32, i32
  }
}

</mosaic_0001>

<llo_original>
// kernel: tpu_custom_call.1
$region0: #{tpu_custom_call.1}
  #allocation0 [shape = 'u32[]', space=smem, size = 0x4, offset = 0x4, fixed_abs, tag = 'smem constant byte address 0x4 - core index']
  #allocation1 [shape = 'u32[72,128]{1,0:T(1,128)}', space=vmem, size = 0x9000, scoped, tag = 'internal scratch']
  %s0 = inlined_call_operand.hbm [shape: f32[8,1024], index: 0, kind: input, shape index: {}]
  %s1 = inlined_call_operand.hbm [shape: bf16[1024,128], index: 1, kind: input, shape index: {}]
  %s2 = inlined_call_operand.vmem [shape: f32[1,128], index: 2, kind: input, shape index: {}]
  %s3 = inlined_call_operand.hbm [shape: bf16[128,128], index: 3, kind: input, shape index: {}]
  %s4 = inlined_call_operand.vmem [shape: f32[1,128], index: 4, kind: input, shape index: {}]
  %s5 = inlined_call_operand.hbm [shape: f32[8,128], index: 5, kind: output, shape index: {0}]
  %s6 = inlined_call_operand.hbm [shape: f32[8,128], index: 6, kind: output, shape index: {1}]
  %7 = xla_tuple %s5, %s6
  %s8 = sld [smem:[#allocation0]]
  $region58: #{tpu_custom_call.1} parent=0
    _
  %s10 = ssub.s32 1, %s8
  %s11 = scalar_select 0, %s10, %s8
  $region1: #{tpu_custom_call.1} parent=0
    #allocation2 [shape = 'u8[32768]{0}', space=vmem, size = 0x8000, scoped, tag = 'input window, operand 0, single buffered']
    #allocation3 [shape = 's32[1]{0}', space=sflag, size = 0x4, scoped, tag = 'scoped memory for tpu_custom_call.1']
    #allocation4 [shape = 's32[1]{0}', space=sflag, size = 0x4, scoped, tag = 'scoped memory for tpu_custom_call.1']
    #allocation5 [shape = 'u8[262144]{0}', space=vmem, size = 0x40000, scoped, tag = 'input window, operand 1, single buffered']
    #allocation6 [shape = 's32[1]{0}', space=sflag, size = 0x4, scoped, tag = 'scoped memory for tpu_custom_call.1']
    #allocation7 [shape = 'u8[32768]{0}', space=vmem, size = 0x8000, scoped, tag = 'input window, operand 3, single buffered']
    #allocation8 [shape = 'u8[4096]{0}', space=vmem, size = 0x1000, scoped, tag = 'output window, operand 0, single buffered']
    #allocation9 [shape = 'u8[4096]{0}', space=vmem, size = 0x1000, scoped, tag = 'output window, operand 1, single buffered']
    #allocation10 [shape = 's32[1]{0}', space=sflag, size = 0x4, scoped, tag = 'scoped memory for tpu_custom_call.1']
    %12 = vsyncpa [#allocation3], 0
    %13 = vsyncpa [#allocation6], 0
    %14 = vsyncpa [#allocation4], 0
    %15 = vsyncpa [#allocation10], 0
    // Predicated region
    $region2: #{tpu_custom_call.1} parent=1 // pred_check
      _
    $region3: #{tpu_custom_call.1} parent=1 // pred_check_branch
      %17 = sbr.rel (0) target = $region5
    $region4: #{tpu_custom_call.1} parent=1 // pred_region
      %19 = vsyncadd [#allocation3], 0
      %s21 = sshll.u32 %s0, 4
      %s22 = int_to_ptr.hbm [resolvable:$true] %s21
      %s23 = sshll.u32 [#allocation2], 4
      %s24 = int_to_ptr.vmem [resolvable:$true] %s23
      %26 = dma.hbm_to_vmem [thread:$0]  %s22, 1024, %s24, [#allocation3]
    $region5: #{tpu_custom_call.1} parent=1 // pred_fallthru
      _
    // Predicated region
    $region6: #{tpu_custom_call.1} parent=1 // pred_check
      _
    $region7: #{tpu_custom_call.1} parent=1 // pred_check_branch
      %28 = sbr.rel (0) target = $region9
    $region8: #{tpu_custom_call.1} parent=1 // pred_region
      %30 = vsyncadd [#allocation6], 0
      %s31 = sshll.u32 %s1, 4
      %s32 = int_to_ptr.hbm [resolvable:$true] %s31
      %s33 = sshll.u32 [#allocation5], 4
      %s34 = int_to_ptr.vmem [resolvable:$true] %s33
      %39 = dma.hbm_to_vmem [thread:$0]  %s32, 8192, %s34, [#allocation6], 64, 64, 4
    $region9: #{tpu_custom_call.1} parent=1 // pred_fallthru
      _
    // Predicated region
    $region10: #{tpu_custom_call.1} parent=1 // pred_check
      _
    $region11: #{tpu_custom_call.1} parent=1 // pred_check_branch
      %41 = sbr.rel (0) target = $region13
    $region12: #{tpu_custom_call.1} parent=1 // pred_region
      _
    $region13: #{tpu_custom_call.1} parent=1 // pred_fallthru
      _
    // Predicated region
    $region14: #{tpu_custom_call.1} parent=1 // pred_check
      _
    $region15: #{tpu_custom_call.1} parent=1 // pred_check_branch
      %43 = sbr.rel (0) target = $region17
    $region16: #{tpu_custom_call.1} parent=1 // pred_region
      %45 = vsyncadd [#allocation6], 0
      %s46 = sshll.u32 %s3, 4
      %s47 = int_to_ptr.hbm [resolvable:$true] %s46
      %s48 = sshll.u32 [#allocation7], 4
      %s49 = int_to_ptr.vmem [resolvable:$true] %s48
      %54 = dma.hbm_to_vmem [thread:$0]  %s47, 1024, %s49, [#allocation6], 64, 64, 4
    $region17: #{tpu_custom_call.1} parent=1 // pred_fallthru
      _
    // Predicated region
    $region18: #{tpu_custom_call.1} parent=1 // pred_check
      _
    $region19: #{tpu_custom_call.1} parent=1 // pred_check_branch
      %56 = sbr.rel (0) target = $region21
    $region20: #{tpu_custom_call.1} parent=1 // pred_region
      _
    $region21: #{tpu_custom_call.1} parent=1 // pred_fallthru
      _
    // Predicated region
    $region22: #{tpu_custom_call.1} parent=1 // pred_check
      _
    $region23: #{tpu_custom_call.1} parent=1 // pred_check_branch
      %58 = sbr.rel (0) target = $region25
    $region24: #{tpu_custom_call.1} parent=1 // pred_region
      %60 = dma.done [#allocation3], 1024
    $region25: #{tpu_custom_call.1} parent=1 // pred_fallthru
      _
    // Predicated region
    $region26: #{tpu_custom_call.1} parent=1 // pred_check
      _
    $region27: #{tpu_custom_call.1} parent=1 // pred_check_branch
      %62 = sbr.rel (0) target = $region29
    $region28: #{tpu_custom_call.1} parent=1 // pred_region
      %64 = dma.done [#allocation6], 8192
    $region29: #{tpu_custom_call.1} parent=1 // pred_fallthru
      _
    // Predicated region
    $region30: #{tpu_custom_call.1} parent=1 // pred_check
      _
    $region31: #{tpu_custom_call.1} parent=1 // pred_check_branch
      %66 = sbr.rel (0) target = $region33
    $region32: #{tpu_custom_call.1} parent=1 // pred_region
      %68 = dma.done [#allocation6], 1024
    $region33: #{tpu_custom_call.1} parent=1 // pred_fallthru
      _
    %p69 = scmp.eq.s32.totalorder 0, 0
    // Predicated region
    $region34: #{tpu_custom_call.1} parent=1 // pred_check
      %p70 = pneg %p69
    $region35: #{tpu_custom_call.1} parent=1 // pred_check_branch
      %72 = sbr.rel (%p70) target = $region37
    $region36: #{tpu_custom_call.1} parent=1 // pred_region
      %73 = vst [vmem:[#allocation9] sm:$0xff] 0.0
    $region37: #{tpu_custom_call.1} parent=1 // pred_fallthru
      _
    %v74 = vld [vmem:[#allocation9] sm:$0xff]
    %v75 = vld [vmem:[#allocation2] sm:$0xff]
    %v76 = vld [vmem:[#allocation2 + $0x8] sm:$0xff]
    %v77 = vld [vmem:[#allocation2 + $0x10] sm:$0xff]
    %v78 = vld [vmem:[#allocation2 + $0x18] sm:$0xff]
    %v79 = vld [vmem:[#allocation2 + $0x20] sm:$0xff]
    %v80 = vld [vmem:[#allocation2 + $0x28] sm:$0xff]
    %v81 = vld [vmem:[#allocation2 + $0x30] sm:$0xff]
    %v82 = vld [vmem:[#allocation2 + $0x38] sm:$0xff]
    %v83 = vpack.c.bf16 %v75, %v75
    %v84 = vpack.c.bf16 %v76, %v76
    %v85 = vpack.c.bf16 %v77, %v77
    %v86 = vpack.c.bf16 %v78, %v78
    %v87 = vpack.c.bf16 %v79, %v79
    %v88 = vpack.c.bf16 %v80, %v80
    %v89 = vpack.c.bf16 %v81, %v81
    %v90 = vpack.c.bf16 %v82, %v82
    %v91 = vld [vmem:[#allocation5] sm:$0xf]
    %v92 = vld [vmem:[#allocation5 + $0x4] sm:$0xf]
    %v93 = vld [vmem:[#allocation5 + $0x8] sm:$0xf]
    %v94 = vld [vmem:[#allocation5 + $0xc] sm:$0xf]
    %v95 = vld [vmem:[#allocation5 + $0x10] sm:$0xf]
    %v96 = vld [vmem:[#allocation5 + $0x14] sm:$0xf]
    %v97 = vld [vmem:[#allocation5 + $0x18] sm:$0xf]
    %v98 = vld [vmem:[#allocation5 + $0x1c] sm:$0xf]
    %v99 = vld [vmem:[#allocation5 + $0x20] sm:$0xf]
    %v100 = vld [vmem:[#allocation5 + $0x24] sm:$0xf]
    %v101 = vld [vmem:[#allocation5 + $0x28] sm:$0xf]
    %v102 = vld [vmem:[#allocation5 + $0x2c] sm:$0xf]
    %v103 = vld [vmem:[#allocation5 + $0x30] sm:$0xf]
    %v104 = vld [vmem:[#allocation5 + $0x34] sm:$0xf]
    %v105 = vld [vmem:[#allocation5 + $0x38] sm:$0xf]
    %v106 = vld [vmem:[#allocation5 + $0x3c] sm:$0xf]
    %v107 = vld [vmem:[#allocation5 + $0x40] sm:$0xf]
    %v108 = vld [vmem:[#allocation5 + $0x44] sm:$0xf]
    %v109 = vld [vmem:[#allocation5 + $0x48] sm:$0xf]
    %v110 = vld [vmem:[#allocation5 + $0x4c] sm:$0xf]
    %v111 = vld [vmem:[#allocation5 + $0x50] sm:$0xf]
    %v112 = vld [vmem:[#allocation5 + $0x54] sm:$0xf]
    %v113 = vld [vmem:[#allocation5 + $0x58] sm:$0xf]
    %v114 = vld [vmem:[#allocation5 + $0x5c] sm:$0xf]
    %v115 = vld [vmem:[#allocation5 + $0x60] sm:$0xf]
    %v116 = vld [vmem:[#allocation5 + $0x64] sm:$0xf]
    %v117 = vld [vmem:[#allocation5 + $0x68] sm:$0xf]
    %v118 = vld [vmem:[#allocation5 + $0x6c] sm:$0xf]
    %v119 = vld [vmem:[#allocation5 + $0x70] sm:$0xf]
    %v120 = vld [vmem:[#allocation5 + $0x74] sm:$0xf]
    %v121 = vld [vmem:[#allocation5 + $0x78] sm:$0xf]
    %v122 = vld [vmem:[#allocation5 + $0x7c] sm:$0xf]
    %v123 = vld [vmem:[#allocation5 + $0x80] sm:$0xf]
    %v124 = vld [vmem:[#allocation5 + $0x84] sm:$0xf]
    %v125 = vld [vmem:[#allocation5 + $0x88] sm:$0xf]
    %v126 = vld [vmem:[#allocation5 + $0x8c] sm:$0xf]
    %v127 = vld [vmem:[#allocation5 + $0x90] sm:$0xf]
    %v128 = vld [vmem:[#allocation5 + $0x94] sm:$0xf]
    %v129 = vld [vmem:[#allocation5 + $0x98] sm:$0xf]
    %v130 = vld [vmem:[#allocation5 + $0x9c] sm:$0xf]
    %v131 = vld [vmem:[#allocation5 + $0xa0] sm:$0xf]
    %v132 = vld [vmem:[#allocation5 + $0xa4] sm:$0xf]
    %v133 = vld [vmem:[#allocation5 + $0xa8] sm:$0xf]
    %v134 = vld [vmem:[#allocation5 + $0xac] sm:$0xf]
    %v135 = vld [vmem:[#allocation5 + $0xb0] sm:$0xf]
    %v136 = vld [vmem:[#allocation5 + $0xb4] sm:$0xf]
    %v137 = vld [vmem:[#allocation5 + $0xb8] sm:$0xf]
    %v138 = vld [vmem:[#allocation5 + $0xbc] sm:$0xf]
    %v139 = vld [vmem:[#allocation5 + $0xc0] sm:$0xf]
    %v140 = vld [vmem:[#allocation5 + $0xc4] sm:$0xf]
    %v141 = vld [vmem:[#allocation5 + $0xc8] sm:$0xf]
    %v142 = vld [vmem:[#allocation5 + $0xcc] sm:$0xf]
    %v143 = vld [vmem:[#allocation5 + $0xd0] sm:$0xf]
    %v144 = vld [vmem:[#allocation5 + $0xd4] sm:$0xf]
    %v145 = vld [vmem:[#allocation5 + $0xd8] sm:$0xf]
    %v146 = vld [vmem:[#allocation5 + $0xdc] sm:$0xf]
    %v147 = vld [vmem:[#allocation5 + $0xe0] sm:$0xf]
    %v148 = vld [vmem:[#allocation5 + $0xe4] sm:$0xf]
    %v149 = vld [vmem:[#allocation5 + $0xe8] sm:$0xf]
    %v150 = vld [vmem:[#allocation5 + $0xec] sm:$0xf]
    %v151 = vld [vmem:[#allocation5 + $0xf0] sm:$0xf]
    %v152 = vld [vmem:[#allocation5 + $0xf4] sm:$0xf]
    %v153 = vld [vmem:[#allocation5 + $0xf8] sm:$0xf]
    %v154 = vld [vmem:[#allocation5 + $0xfc] sm:$0xf]
    %v155 = vld [vmem:[#allocation5 + $0x100] sm:$0xf]
    %v156 = vld [vmem:[#allocation5 + $0x104] sm:$0xf]
    %v157 = vld [vmem:[#allocation5 + $0x108] sm:$0xf]
    %v158 = vld [vmem:[#allocation5 + $0x10c] sm:$0xf]
    %v159 = vld [vmem:[#allocation5 + $0x110] sm:$0xf]
    %v160 = vld [vmem:[#allocation5 + $0x114] sm:$0xf]
    %v161 = vld [vmem:[#allocation5 + $0x118] sm:$0xf]
    %v162 = vld [vmem:[#allocation5 + $0x11c] sm:$0xf]
    %v163 = vld [vmem:[#allocation5 + $0x120] sm:$0xf]
    %v164 = vld [vmem:[#allocation5 + $0x124] sm:$0xf]
    %v165 = vld [vmem:[#allocation5 + $0x128] sm:$0xf]
    %v166 = vld [vmem:[#allocation5 + $0x12c] sm:$0xf]
    %v167 = vld [vmem:[#allocation5 + $0x130] sm:$0xf]
    %v168 = vld [vmem:[#allocation5 + $0x134] sm:$0xf]
    %v169 = vld [vmem:[#allocation5 + $0x138] sm:$0xf]
    %v170 = vld [vmem:[#allocation5 + $0x13c] sm:$0xf]
    %v171 = vld [vmem:[#allocation5 + $0x140] sm:$0xf]
    %v172 = vld [vmem:[#allocation5 + $0x144] sm:$0xf]
    %v173 = vld [vmem:[#allocation5 + $0x148] sm:$0xf]
    %v174 = vld [vmem:[#allocation5 + $0x14c] sm:$0xf]
    %v175 = vld [vmem:[#allocation5 + $0x150] sm:$0xf]
    %v176 = vld [vmem:[#allocation5 + $0x154] sm:$0xf]
    %v177 = vld [vmem:[#allocation5 + $0x158] sm:$0xf]
    %v178 = vld [vmem:[#allocation5 + $0x15c] sm:$0xf]
    %v179 = vld [vmem:[#allocation5 + $0x160] sm:$0xf]
    %v180 = vld [vmem:[#allocation5 + $0x164] sm:$0xf]
    %v181 = vld [vmem:[#allocation5 + $0x168] sm:$0xf]
    %v182 = vld [vmem:[#allocation5 + $0x16c] sm:$0xf]
    %v183 = vld [vmem:[#allocation5 + $0x170] sm:$0xf]
    %v184 = vld [vmem:[#allocation5 + $0x174] sm:$0xf]
    %v185 = vld [vmem:[#allocation5 + $0x178] sm:$0xf]
    %v186 = vld [vmem:[#allocation5 + $0x17c] sm:$0xf]
    %v187 = vld [vmem:[#allocation5 + $0x180] sm:$0xf]
    %v188 = vld [vmem:[#allocation5 + $0x184] sm:$0xf]
    %v189 = vld [vmem:[#allocation5 + $0x188] sm:$0xf]
    %v190 = vld [vmem:[#allocation5 + $0x18c] sm:$0xf]
    %v191 = vld [vmem:[#allocation5 + $0x190] sm:$0xf]
    %v192 = vld [vmem:[#allocation5 + $0x194] sm:$0xf]
    %v193 = vld [vmem:[#allocation5 + $0x198] sm:$0xf]
    %v194 = vld [vmem:[#allocation5 + $0x19c] sm:$0xf]
    %v195 = vld [vmem:[#allocation5 + $0x1a0] sm:$0xf]
    %v196 = vld [vmem:[#allocation5 + $0x1a4] sm:$0xf]
    %v197 = vld [vmem:[#allocation5 + $0x1a8] sm:$0xf]
    %v198 = vld [vmem:[#allocation5 + $0x1ac] sm:$0xf]
    %v199 = vld [vmem:[#allocation5 + $0x1b0] sm:$0xf]
    %v200 = vld [vmem:[#allocation5 + $0x1b4] sm:$0xf]
    %v201 = vld [vmem:[#allocation5 + $0x1b8] sm:$0xf]
    %v202 = vld [vmem:[#allocation5 + $0x1bc] sm:$0xf]
    %v203 = vld [vmem:[#allocation5 + $0x1c0] sm:$0xf]
    %v204 = vld [vmem:[#allocation5 + $0x1c4] sm:$0xf]
    %v205 = vld [vmem:[#allocation5 + $0x1c8] sm:$0xf]
    %v206 = vld [vmem:[#allocation5 + $0x1cc] sm:$0xf]
    %v207 = vld [vmem:[#allocation5 + $0x1d0] sm:$0xf]
    %v208 = vld [vmem:[#allocation5 + $0x1d4] sm:$0xf]
    %v209 = vld [vmem:[#allocation5 + $0x1d8] sm:$0xf]
    %v210 = vld [vmem:[#allocation5 + $0x1dc] sm:$0xf]
    %v211 = vld [vmem:[#allocation5 + $0x1e0] sm:$0xf]
    %v212 = vld [vmem:[#allocation5 + $0x1e4] sm:$0xf]
    %v213 = vld [vmem:[#allocation5 + $0x1e8] sm:$0xf]
    %v214 = vld [vmem:[#allocation5 + $0x1ec] sm:$0xf]
    %v215 = vld [vmem:[#allocation5 + $0x1f0] sm:$0xf]
    %v216 = vld [vmem:[#allocation5 + $0x1f4] sm:$0xf]
    %v217 = vld [vmem:[#allocation5 + $0x1f8] sm:$0xf]
    %v218 = vld [vmem:[#allocation5 + $0x1fc] sm:$0xf]
    %v347 = vunpack.c.l.b16 %v91
    %v348 = vunpack.c.l.b16 %v92
    %v349 = vunpack.c.l.b16 %v93
    %v350 = vunpack.c.l.b16 %v94
    %v351 = vunpack.c.l.b16 %v95
    %v352 = vunpack.c.l.b16 %v96
    %v353 = vunpack.c.l.b16 %v97
    %v354 = vunpack.c.l.b16 %v98
    %v355 = vunpack.c.l.b16 %v99
    %v356 = vunpack.c.l.b16 %v100
    %v357 = vunpack.c.l.b16 %v101
    %v358 = vunpack.c.l.b16 %v102
    %v359 = vunpack.c.l.b16 %v103
    %v360 = vunpack.c.l.b16 %v104
    %v361 = vunpack.c.l.b16 %v105
    %v362 = vunpack.c.l.b16 %v106
    %v363 = vunpack.c.l.b16 %v107
    %v364 = vunpack.c.l.b16 %v108
    %v365 = vunpack.c.l.b16 %v109
    %v366 = vunpack.c.l.b16 %v110
    %v367 = vunpack.c.l.b16 %v111
    %v368 = vunpack.c.l.b16 %v112
    %v369 = vunpack.c.l.b16 %v113
    %v370 = vunpack.c.l.b16 %v114
    %v371 = vunpack.c.l.b16 %v115
    %v372 = vunpack.c.l.b16 %v116
    %v373 = vunpack.c.l.b16 %v117
    %v374 = vunpack.c.l.b16 %v118
    %v375 = vunpack.c.l.b16 %v119
    %v376 = vunpack.c.l.b16 %v120
    %v377 = vunpack.c.l.b16 %v121
    %v378 = vunpack.c.l.b16 %v122
    %v379 = vunpack.c.l.b16 %v123
    %v380 = vunpack.c.l.b16 %v124
    %v381 = vunpack.c.l.b16 %v125
    %v382 = vunpack.c.l.b16 %v126
    %v383 = vunpack.c.l.b16 %v127
    %v384 = vunpack.c.l.b16 %v128
    %v385 = vunpack.c.l.b16 %v129
    %v386 = vunpack.c.l.b16 %v130
    %v387 = vunpack.c.l.b16 %v131
    %v388 = vunpack.c.l.b16 %v132
    %v389 = vunpack.c.l.b16 %v133
    %v390 = vunpack.c.l.b16 %v134
    %v391 = vunpack.c.l.b16 %v135
    %v392 = vunpack.c.l.b16 %v136
    %v393 = vunpack.c.l.b16 %v137
    %v394 = vunpack.c.l.b16 %v138
    %v395 = vunpack.c.l.b16 %v139
    %v396 = vunpack.c.l.b16 %v140
    %v397 = vunpack.c.l.b16 %v141
    %v398 = vunpack.c.l.b16 %v142
    %v399 = vunpack.c.l.b16 %v143
    %v400 = vunpack.c.l.b16 %v144
    %v401 = vunpack.c.l.b16 %v145
    %v402 = vunpack.c.l.b16 %v146
    %v403 = vunpack.c.l.b16 %v147
    %v404 = vunpack.c.l.b16 %v148
    %v405 = vunpack.c.l.b16 %v149
    %v406 = vunpack.c.l.b16 %v150
    %v407 = vunpack.c.l.b16 %v151
    %v408 = vunpack.c.l.b16 %v152
    %v409 = vunpack.c.l.b16 %v153
    %v410 = vunpack.c.l.b16 %v154
    %v411 = vunpack.c.l.b16 %v155
    %v412 = vunpack.c.l.b16 %v156
    %v413 = vunpack.c.l.b16 %v157
    %v414 = vunpack.c.l.b16 %v158
    %v415 = vunpack.c.l.b16 %v159
    %v416 = vunpack.c.l.b16 %v160
    %v417 = vunpack.c.l.b16 %v161
    %v418 = vunpack.c.l.b16 %v162
    %v419 = vunpack.c.l.b16 %v163
    %v420 = vunpack.c.l.b16 %v164
    %v421 = vunpack.c.l.b16 %v165
    %v422 = vunpack.c.l.b16 %v166
    %v423 = vunpack.c.l.b16 %v167
    %v424 = vunpack.c.l.b16 %v168
    %v425 = vunpack.c.l.b16 %v169
    %v426 = vunpack.c.l.b16 %v170
    %v427 = vunpack.c.l.b16 %v171
    %v428 = vunpack.c.l.b16 %v172
    %v429 = vunpack.c.l.b16 %v173
    %v430 = vunpack.c.l.b16 %v174
    %v431 = vunpack.c.l.b16 %v175
    %v432 = vunpack.c.l.b16 %v176
    %v433 = vunpack.c.l.b16 %v177
    %v434 = vunpack.c.l.b16 %v178
    %v435 = vunpack.c.l.b16 %v179
    %v436 = vunpack.c.l.b16 %v180
    %v437 = vunpack.c.l.b16 %v181
    %v438 = vunpack.c.l.b16 %v182
    %v439 = vunpack.c.l.b16 %v183
    %v440 = vunpack.c.l.b16 %v184
    %v441 = vunpack.c.l.b16 %v185
    %v442 = vunpack.c.l.b16 %v186
    %v443 = vunpack.c.l.b16 %v187
    %v444 = vunpack.c.l.b16 %v188
    %v445 = vunpack.c.l.b16 %v189
    %v446 = vunpack.c.l.b16 %v190
    %v447 = vunpack.c.l.b16 %v191
    %v448 = vunpack.c.l.b16 %v192
    %v449 = vunpack.c.l.b16 %v193
    %v450 = vunpack.c.l.b16 %v194
    %v451 = vunpack.c.l.b16 %v195
    %v452 = vunpack.c.l.b16 %v196
    %v453 = vunpack.c.l.b16 %v197
    %v454 = vunpack.c.l.b16 %v198
    %v455 = vunpack.c.l.b16 %v199
    %v456 = vunpack.c.l.b16 %v200
    %v457 = vunpack.c.l.b16 %v201
    %v458 = vunpack.c.l.b16 %v202
    %v459 = vunpack.c.l.b16 %v203
    %v460 = vunpack.c.l.b16 %v204
    %v461 = vunpack.c.l.b16 %v205
    %v462 = vunpack.c.l.b16 %v206
    %v463 = vunpack.c.l.b16 %v207
    %v464 = vunpack.c.l.b16 %v208
    %v465 = vunpack.c.l.b16 %v209
    %v466 = vunpack.c.l.b16 %v210
    %v467 = vunpack.c.l.b16 %v211
    %v468 = vunpack.c.l.b16 %v212
    %v469 = vunpack.c.l.b16 %v213
    %v470 = vunpack.c.l.b16 %v214
    %v471 = vunpack.c.l.b16 %v215
    %v472 = vunpack.c.l.b16 %v216
    %v473 = vunpack.c.l.b16 %v217
    %v474 = vunpack.c.l.b16 %v218
    %v475 = vpack.c.b16 %v348, %v347
    %v476 = vpack.c.b16 %v350, %v349
    %v477 = vpack.c.b16 %v352, %v351
    %v478 = vpack.c.b16 %v354, %v353
    %v479 = vpack.c.b16 %v356, %v355
    %v480 = vpack.c.b16 %v358, %v357
    %v481 = vpack.c.b16 %v360, %v359
    %v482 = vpack.c.b16 %v362, %v361
    %v483 = vpack.c.b16 %v364, %v363
    %v484 = vpack.c.b16 %v366, %v365
    %v485 = vpack.c.b16 %v368, %v367
    %v486 = vpack.c.b16 %v370, %v369
    %v487 = vpack.c.b16 %v372, %v371
    %v488 = vpack.c.b16 %v374, %v373
    %v489 = vpack.c.b16 %v376, %v375
    %v490 = vpack.c.b16 %v378, %v377
    %v491 = vpack.c.b16 %v380, %v379
    %v492 = vpack.c.b16 %v382, %v381
    %v493 = vpack.c.b16 %v384, %v383
    %v494 = vpack.c.b16 %v386, %v385
    %v495 = vpack.c.b16 %v388, %v387
    %v496 = vpack.c.b16 %v390, %v389
    %v497 = vpack.c.b16 %v392, %v391
    %v498 = vpack.c.b16 %v394, %v393
    %v499 = vpack.c.b16 %v396, %v395
    %v500 = vpack.c.b16 %v398, %v397
    %v501 = vpack.c.b16 %v400, %v399
    %v502 = vpack.c.b16 %v402, %v401
    %v503 = vpack.c.b16 %v404, %v403
    %v504 = vpack.c.b16 %v406, %v405
    %v505 = vpack.c.b16 %v408, %v407
    %v506 = vpack.c.b16 %v410, %v409
    %v507 = vpack.c.b16 %v412, %v411
    %v508 = vpack.c.b16 %v414, %v413
    %v509 = vpack.c.b16 %v416, %v415
    %v510 = vpack.c.b16 %v418, %v417
    %v511 = vpack.c.b16 %v420, %v419
    %v512 = vpack.c.b16 %v422, %v421
    %v513 = vpack.c.b16 %v424, %v423
    %v514 = vpack.c.b16 %v426, %v425
    %v515 = vpack.c.b16 %v428, %v427
    %v516 = vpack.c.b16 %v430, %v429
    %v517 = vpack.c.b16 %v432, %v431
    %v518 = vpack.c.b16 %v434, %v433
    %v519 = vpack.c.b16 %v436, %v435
    %v520 = vpack.c.b16 %v438, %v437
    %v521 = vpack.c.b16 %v440, %v439
    %v522 = vpack.c.b16 %v442, %v441
    %v523 = vpack.c.b16 %v444, %v443
    %v524 = vpack.c.b16 %v446, %v445
    %v525 = vpack.c.b16 %v448, %v447
    %v526 = vpack.c.b16 %v450, %v449
    %v527 = vpack.c.b16 %v452, %v451
    %v528 = vpack.c.b16 %v454, %v453
    %v529 = vpack.c.b16 %v456, %v455
    %v530 = vpack.c.b16 %v458, %v457
    %v531 = vpack.c.b16 %v460, %v459
    %v532 = vpack.c.b16 %v462, %v461
    %v533 = vpack.c.b16 %v464, %v463
    %v534 = vpack.c.b16 %v466, %v465
    %v535 = vpack.c.b16 %v468, %v467
    %v536 = vpack.c.b16 %v470, %v469
    %v537 = vpack.c.b16 %v472, %v471
    %v538 = vpack.c.b16 %v474, %v473
    %603 = vmatpush.bf16.msra.mxu0 %v482
    %604 = vmatpush.bf16.msra.mxu0 %v481
    %605 = vmatpush.bf16.msra.mxu0 %v480
    %606 = vmatpush.bf16.msra.mxu0 %v479
    %607 = vmatpush.bf16.msra.mxu0 %v478
    %608 = vmatpush.bf16.msra.mxu0 %v477
    %609 = vmatpush.bf16.msra.mxu0 %v476
    %610 = vmatpush.bf16.msra.mxu0 %v475
    %611 = vmatmul.bf16.gmra.mxu0 %v83
    %v612 = vpop.f32.mrf.mxu0
    %v613 = vadd.f32 0.0, %v612
    %v614 = vpop.f32.mrf.mxu0
    %615 = vdwg.mxu0
    %616 = vmatpush.bf16.msra.mxu0 %v490
    %617 = vmatpush.bf16.msra.mxu0 %v489
    %618 = vmatpush.bf16.msra.mxu0 %v488
    %619 = vmatpush.bf16.msra.mxu0 %v487
    %620 = vmatpush.bf16.msra.mxu0 %v486
    %621 = vmatpush.bf16.msra.mxu0 %v485
    %622 = vmatpush.bf16.msra.mxu0 %v484
    %623 = vmatpush.bf16.msra.mxu0 %v483
    %624 = vmatmul.bf16.gmra.mxu0 %v84
    %v625 = vpop.f32.mrf.mxu0
    %v626 = vadd.f32 %v613, %v625
    %v627 = vpop.f32.mrf.mxu0
    %628 = vdwg.mxu0
    %629 = vmatpush.bf16.msra.mxu0 %v498
    %630 = vmatpush.bf16.msra.mxu0 %v497
    %631 = vmatpush.bf16.msra.mxu0 %v496
    %632 = vmatpush.bf16.msra.mxu0 %v495
    %633 = vmatpush.bf16.msra.mxu0 %v494
    %634 = vmatpush.bf16.msra.mxu0 %v493
    %635 = vmatpush.bf16.msra.mxu0 %v492
    %636 = vmatpush.bf16.msra.mxu0 %v491
    %637 = vmatmul.bf16.gmra.mxu0 %v85
    %v638 = vpop.f32.mrf.mxu0
    %v639 = vadd.f32 %v626, %v638
    %v640 = vpop.f32.mrf.mxu0
    %641 = vdwg.mxu0
    %642 = vmatpush.bf16.msra.mxu0 %v506
    %643 = vmatpush.bf16.msra.mxu0 %v505
    %644 = vmatpush.bf16.msra.mxu0 %v504
    %645 = vmatpush.bf16.msra.mxu0 %v503
    %646 = vmatpush.bf16.msra.mxu0 %v502
    %647 = vmatpush.bf16.msra.mxu0 %v501
    %648 = vmatpush.bf16.msra.mxu0 %v500
    %649 = vmatpush.bf16.msra.mxu0 %v499
    %650 = vmatmul.bf16.gmra.mxu0 %v86
    %v651 = vpop.f32.mrf.mxu0
    %v652 = vadd.f32 %v639, %v651
    %v653 = vpop.f32.mrf.mxu0
    %654 = vdwg.mxu0
    %655 = vmatpush.bf16.msra.mxu0 %v514
    %656 = vmatpush.bf16.msra.mxu0 %v513
    %657 = vmatpush.bf16.msra.mxu0 %v512
    %658 = vmatpush.bf16.msra.mxu0 %v511
    %659 = vmatpush.bf16.msra.mxu0 %v510
    %660 = vmatpush.bf16.msra.mxu0 %v509
    %661 = vmatpush.bf16.msra.mxu0 %v508
    %662 = vmatpush.bf16.msra.mxu0 %v507
    %663 = vmatmul.bf16.gmra.mxu0 %v87
    %v664 = vpop.f32.mrf.mxu0
    %v665 = vadd.f32 %v652, %v664
    %v666 = vpop.f32.mrf.mxu0
    %667 = vdwg.mxu0
    %668 = vmatpush.bf16.msra.mxu0 %v522
    %669 = vmatpush.bf16.msra.mxu0 %v521
    %670 = vmatpush.bf16.msra.mxu0 %v520
    %671 = vmatpush.bf16.msra.mxu0 %v519
    %672 = vmatpush.bf16.msra.mxu0 %v518
    %673 = vmatpush.bf16.msra.mxu0 %v517
    %674 = vmatpush.bf16.msra.mxu0 %v516
    %675 = vmatpush.bf16.msra.mxu0 %v515
    %676 = vmatmul.bf16.gmra.mxu0 %v88
    %v677 = vpop.f32.mrf.mxu0
    %v678 = vadd.f32 %v665, %v677
    %v679 = vpop.f32.mrf.mxu0
    %680 = vdwg.mxu0
    %681 = vmatpush.bf16.msra.mxu0 %v530
    %682 = vmatpush.bf16.msra.mxu0 %v529
    %683 = vmatpush.bf16.msra.mxu0 %v528
    %684 = vmatpush.bf16.msra.mxu0 %v527
    %685 = vmatpush.bf16.msra.mxu0 %v526
    %686 = vmatpush.bf16.msra.mxu0 %v525
    %687 = vmatpush.bf16.msra.mxu0 %v524
    %688 = vmatpush.bf16.msra.mxu0 %v523
    %689 = vmatmul.bf16.gmra.mxu0 %v89
    %v690 = vpop.f32.mrf.mxu0
    %v691 = vadd.f32 %v678, %v690
    %v692 = vpop.f32.mrf.mxu0
    %693 = vdwg.mxu0
    %694 = vmatpush.bf16.msra.mxu0 %v538
    %695 = vmatpush.bf16.msra.mxu0 %v537
    %696 = vmatpush.bf16.msra.mxu0 %v536
    %697 = vmatpush.bf16.msra.mxu0 %v535
    %698 = vmatpush.bf16.msra.mxu0 %v534
    %699 = vmatpush.bf16.msra.mxu0 %v533
    %700 = vmatpush.bf16.msra.mxu0 %v532
    %701 = vmatpush.bf16.msra.mxu0 %v531
    %702 = vmatmul.bf16.gmra.mxu0 %v90
    %v703 = vpop.f32.mrf.mxu0
    %v704 = vadd.f32 %v691, %v703
    %v705 = vpop.f32.mrf.mxu0
    %706 = vdwg.mxu0
    %v707 = vadd.f32 %v74, %v704
    %708 = vst [vmem:[#allocation9] sm:$0xff] %v707
    // Predicated region
    $region38: #{tpu_custom_call.1} parent=1 // pred_check
      %p709 = pneg %p69
    $region39: #{tpu_custom_call.1} parent=1 // pred_check_branch
      %711 = sbr.rel (%p709) target = $region41
    $region40: #{tpu_custom_call.1} parent=1 // pred_region
      %v712 = vld [vmem:[#allocation9] sm:$0xff]
      %v713 = vld [vmem:[%s2] sm:$0x1]
      %v715 = vperm.slane %v713, 0
      %v717 = vadd.f32 %v712, %v715
      %v718 = vmax.f32 %v717, 0.0
      %719 = vst [vmem:[#allocation9] sm:$0xff] %v718
      %v720 = vpack.c.bf16 %v718, %v718
      %v721 = vld [vmem:[#allocation7] sm:$0xf]
      %v722 = vld [vmem:[#allocation7 + $0x4] sm:$0xf]
      %v723 = vld [vmem:[#allocation7 + $0x8] sm:$0xf]
      %v724 = vld [vmem:[#allocation7 + $0xc] sm:$0xf]
      %v725 = vld [vmem:[#allocation7 + $0x10] sm:$0xf]
      %v726 = vld [vmem:[#allocation7 + $0x14] sm:$0xf]
      %v727 = vld [vmem:[#allocation7 + $0x18] sm:$0xf]
      %v728 = vld [vmem:[#allocation7 + $0x1c] sm:$0xf]
      %v729 = vld [vmem:[#allocation7 + $0x20] sm:$0xf]
      %v730 = vld [vmem:[#allocation7 + $0x24] sm:$0xf]
      %v731 = vld [vmem:[#allocation7 + $0x28] sm:$0xf]
      %v732 = vld [vmem:[#allocation7 + $0x2c] sm:$0xf]
      %v733 = vld [vmem:[#allocation7 + $0x30] sm:$0xf]
      %v734 = vld [vmem:[#allocation7 + $0x34] sm:$0xf]
      %v735 = vld [vmem:[#allocation7 + $0x38] sm:$0xf]
      %v736 = vld [vmem:[#allocation7 + $0x3c] sm:$0xf]
      %v737 = vld [vmem:[%s4] sm:$0x1]
      %v739 = vperm.slane %v737, 0
      %v757 = vunpack.c.l.b16 %v721
      %v758 = vunpack.c.l.b16 %v722
      %v759 = vunpack.c.l.b16 %v723
      %v760 = vunpack.c.l.b16 %v724
      %v761 = vunpack.c.l.b16 %v725
      %v762 = vunpack.c.l.b16 %v726
      %v763 = vunpack.c.l.b16 %v727
      %v764 = vunpack.c.l.b16 %v728
      %v765 = vunpack.c.l.b16 %v729
      %v766 = vunpack.c.l.b16 %v730
      %v767 = vunpack.c.l.b16 %v731
      %v768 = vunpack.c.l.b16 %v732
      %v769 = vunpack.c.l.b16 %v733
      %v770 = vunpack.c.l.b16 %v734
      %v771 = vunpack.c.l.b16 %v735
      %v772 = vunpack.c.l.b16 %v736
      %v773 = vpack.c.b16 %v758, %v757
      %v774 = vpack.c.b16 %v760, %v759
      %v775 = vpack.c.b16 %v762, %v761
      %v776 = vpack.c.b16 %v764, %v763
      %v777 = vpack.c.b16 %v766, %v765
      %v778 = vpack.c.b16 %v768, %v767
      %v779 = vpack.c.b16 %v770, %v769
      %v780 = vpack.c.b16 %v772, %v771
      %789 = vmatpush.bf16.msra.mxu0 %v780
      %790 = vmatpush.bf16.msra.mxu0 %v779
      %791 = vmatpush.bf16.msra.mxu0 %v778
      %792 = vmatpush.bf16.msra.mxu0 %v777
      %793 = vmatpush.bf16.msra.mxu0 %v776
      %794 = vmatpush.bf16.msra.mxu0 %v775
      %795 = vmatpush.bf16.msra.mxu0 %v774
      %796 = vmatpush.bf16.msra.mxu0 %v773
      %797 = vmatmul.bf16.gmra.mxu0 %v720
      %v798 = vpop.f32.mrf.mxu0
      %v799 = vadd.f32 %v739, %v798
      %v800 = vpop.f32.mrf.mxu0
      %801 = vdwg.mxu0
      %802 = vst [vmem:[#allocation8] sm:$0xff] %v799
    $region41: #{tpu_custom_call.1} parent=1 // pred_fallthru
      _
    // Predicated region
    $region42: #{tpu_custom_call.1} parent=1 // pred_check
      _
    $region43: #{tpu_custom_call.1} parent=1 // pred_check_branch
      %804 = sbr.rel (0) target = $region45
    $region44: #{tpu_custom_call.1} parent=1 // pred_region
      %806 = vsyncadd [#allocation4], 0
      %s808 = sshll.u32 [#allocation8], 4
      %s809 = int_to_ptr.vmem [resolvable:$true] %s808
      %s810 = sshll.u32 %s5, 4
      %s811 = int_to_ptr.hbm [resolvable:$true] %s810
      %813 = dma.vmem_to_hbm [thread:$0]  %s809, 128, %s811, [#allocation4]
    $region45: #{tpu_custom_call.1} parent=1 // pred_fallthru
      _
    // Predicated region
    $region46: #{tpu_custom_call.1} parent=1 // pred_check
      _
    $region47: #{tpu_custom_call.1} parent=1 // pred_check_branch
      %815 = sbr.rel (0) target = $region49
    $region48: #{tpu_custom_call.1} parent=1 // pred_region
      %817 = vsyncadd [#allocation10], 0
      %s819 = sshll.u32 [#allocation9], 4
      %s820 = int_to_ptr.vmem [resolvable:$true] %s819
      %s821 = sshll.u32 %s6, 4
      %s822 = int_to_ptr.hbm [resolvable:$true] %s821
      %824 = dma.vmem_to_hbm [thread:$0]  %s820, 128, %s822, [#allocation10]
    $region49: #{tpu_custom_call.1} parent=1 // pred_fallthru
      _
    // Predicated region
    $region50: #{tpu_custom_call.1} parent=1 // pred_check
      _
    $region51: #{tpu_custom_call.1} parent=1 // pred_check_branch
      %826 = sbr.rel (0) target = $region53
    $region52: #{tpu_custom_call.1} parent=1 // pred_region
      %828 = dma.done [#allocation4], 128
    $region53: #{tpu_custom_call.1} parent=1 // pred_fallthru
      _
    // Predicated region
    $region54: #{tpu_custom_call.1} parent=1 // pred_check
      _
    $region55: #{tpu_custom_call.1} parent=1 // pred_check_branch
      %830 = sbr.rel (0) target = $region57
    $region56: #{tpu_custom_call.1} parent=1 // pred_region
      %832 = dma.done [#allocation10], 128
    $region57: #{tpu_custom_call.1} parent=1 // pred_fallthru
      _
    %833 = vsyncpa [#allocation3], 1
    %834 = vsyncpa [#allocation6], 1
    %835 = vsyncpa [#allocation4], 1
    %836 = vsyncpa [#allocation10], 1

</llo_original>
